<compile_context>
chip_gen: v6e
topology: v6e:2x2x1
jax: 0.10.0
libtpu: 0.0.40
codegen_flags: <defaults>
</compile_context>

<pallas_src>
import jax
import jax.numpy as jnp
from jax.experimental import pallas as pl
from jax.experimental.pallas import tpu as pltpu


# ---------------------------------------------------------------------------
# helpers
# ---------------------------------------------------------------------------
def _round_up(x, m):
    return ((x + m - 1) // m) * m


def _cdiv(a, b):
    return -(-a // b)


def _vmem_cap_bytes():
    """Generation-aware VMEM budget: v7x has 64 MiB/TC, v5e/v6e have 128 MiB."""
    try:
        kind = jax.devices()[0].device_kind.lower()
    except Exception:
        kind = ""
    if "v7" in kind or "7x" in kind:
        return 48 * 1024 * 1024
    return 96 * 1024 * 1024


def _estimate_vmem_bytes(TM, Dp, TH, w_isz, x_isz, o_isz):
    wbytes = 2 * 2 * Dp * TH * w_isz      # W1 + W2 blocks, double-buffered
    bbytes = 2 * (TH + Dp) * 4            # biases, double-buffered f32
    xbytes = 2 * TM * Dp * x_isz          # x rows, double-buffered
    obytes = 2 * TM * Dp * o_isz          # out rows, double-buffered
    scratch = TM * Dp * 4                 # f32 accumulator (worst case)
    interm = 2 * TM * TH * 4              # h (f32) + bf16 copy headroom
    return wbytes + bbytes + xbytes + obytes + scratch + interm


def _choose_row_tiles(R, row_tile):
    """Row tile (multiple of 16 for bf16 sublane packing) and padded row count.

    Guarantees >= 2 row tiles when R allows it, so the "parallel" grid axis can
    shard across both TensorCores on v7x.
    """
    tm = max(16, min(_round_up(row_tile, 16), _round_up(R, 16)))
    n = _cdiv(R, tm)
    if n == 1 and R > 16:
        tm = max(16, _round_up(_cdiv(R, 2), 16))
        n = _cdiv(R, tm)
    return tm, n * tm


# ---------------------------------------------------------------------------
# kernels
# ---------------------------------------------------------------------------
def _resident_kernel(x_ref, w1_ref, b1_ref, w2_ref, b2_ref, out_ref):
    """Full FF per row tile; W1/W2 fully VMEM-resident (constant block index)."""
    x = x_ref[...]
    h = jnp.dot(x.astype(w1_ref.dtype), w1_ref[...],
                preferred_element_type=jnp.float32)
    h = jax.nn.gelu(h + b1_ref[...].astype(jnp.float32))
    y = jnp.dot(h.astype(w2_ref.dtype), w2_ref[...],
                preferred_element_type=jnp.float32)
    out_ref[...] = (x.astype(jnp.float32) + y
                    + b2_ref[...].astype(jnp.float32)).astype(out_ref.dtype)


def _chunked_kernel_direct(x_ref, w1_ref, b1_ref, w2_ref, b2_ref, out_ref):
    """H-chunked path, f32 output: accumulate directly into out_ref (no scratch)."""
    k = pl.program_id(1)

    @pl.when(k == 0)
    def _init():
        # Fold residual + final bias in exactly once.
        out_ref[...] = x_ref[...].astype(jnp.float32) + b2_ref[...]

    x = x_ref[...]
    h = jnp.dot(x.astype(w1_ref.dtype), w1_ref[...],
                preferred_element_type=jnp.float32)
    h = jax.nn.gelu(h + b1_ref[...].astype(jnp.float32))
    out_ref[...] += jnp.dot(h.astype(w2_ref.dtype), w2_ref[...],
                            preferred_element_type=jnp.float32)


def _chunked_kernel_scratch(x_ref, w1_ref, b1_ref, w2_ref, b2_ref, out_ref,
                            acc_ref):
    """H-chunked path, non-f32 output: f32 VMEM accumulator, cast at the end."""
    k = pl.program_id(1)

    @pl.when(k == 0)
    def _init():
        acc_ref[...] = (x_ref[...].astype(jnp.float32)
                        + b2_ref[...].astype(jnp.float32))

    x = x_ref[...]
    h = jnp.dot(x.astype(w1_ref.dtype), w1_ref[...],
                preferred_element_type=jnp.float32)
    h = jax.nn.gelu(h + b1_ref[...].astype(jnp.float32))
    acc_ref[...] += jnp.dot(h.astype(w2_ref.dtype), w2_ref[...],
                            preferred_element_type=jnp.float32)

    @pl.when(k == pl.num_programs(1) - 1)
    def _finalize():
        out_ref[...] = acc_ref[...].astype(out_ref.dtype)


# ---------------------------------------------------------------------------
# wrapper
# ---------------------------------------------------------------------------
def residual_forward(feats, coors, w1, b1, w2, b2, *, row_tile=512, h_tile=512,
                     compute_dtype=jnp.bfloat16, weights_resident=None):
    """Pallas implementation of Residual(FeedForward)(feats, coors)."""
    B, N, D = feats.shape
    H = w1.shape[1]
    out_dtype = feats.dtype

    R = B * N
    Dp = _round_up(D, 128)                 # lane-dense channel dim
    Hp0 = _round_up(H, 128)                # lane-dense hidden dim

    TM, R_pad = _choose_row_tiles(R, row_tile)
    n_row = R_pad // TM

    cap = _vmem_cap_bytes()
    w_isz = jnp.dtype(compute_dtype).itemsize
    x_isz = jnp.dtype(feats.dtype).itemsize
    o_isz = jnp.dtype(out_dtype).itemsize

    if weights_resident is None:
        weights_resident = (
            _estimate_vmem_bytes(TM, Dp, Hp0, w_isz, x_isz, o_isz) <= cap)

    if weights_resident:
        TH = Hp = Hp0
    else:
        TH = min(max(128, _round_up(h_tile, 128)), Hp0)
        Hp = _round_up(Hp0, TH)            # pad H up to a multiple of TH (exact)

    vmem_est = _estimate_vmem_bytes(TM, Dp, TH, w_isz, x_isz, o_isz)
    vmem_limit = int(min(cap, max(int(1.5 * vmem_est), 32 * 1024 * 1024)))

    # Activations: skip pad / slice entirely when already aligned.
    x = feats.reshape(R, D)
    pad_x = (R_pad != R) or (Dp != D)
    if pad_x:
        x = jnp.pad(x, ((0, R_pad - R), (0, Dp - D)))

    # Weights: cast matmul operands to compute_dtype (bf16 -> native MXU path,
    # half the weight DMA bytes); biases / residual / GELU stay f32.
    # TODO(synk): weights are static across calls -- hoist this pad/cast out of
    # the per-forward hot path (or accept pre-padded / pre-cast weights).
    w1p = jnp.pad(w1.astype(compute_dtype), ((0, Dp - D), (0, Hp - H)))
    w2p = jnp.pad(w2.astype(compute_dtype), ((0, Hp - H), (0, Dp - D)))
    b1p = jnp.pad(b1.reshape(1, H).astype(jnp.float32), ((0, 0), (0, Hp - H)))
    b2p = jnp.pad(b2.reshape(1, D).astype(jnp.float32), ((0, 0), (0, Dp - D)))

    if weights_resident:
        out = pl.pallas_call(
            _resident_kernel,
            out_shape=jax.ShapeDtypeStruct((R_pad, Dp), out_dtype),
            grid_spec=pltpu.PrefetchScalarGridSpec(
                num_scalar_prefetch=0,
                grid=(n_row,),
                in_specs=[
                    pl.BlockSpec((TM, Dp), lambda i: (i, 0)),   # feats rows
                    pl.BlockSpec((Dp, Hp), lambda i: (0, 0)),   # W1 (resident)
                    pl.BlockSpec((1, Hp),  lambda i: (0, 0)),   # b1
                    pl.BlockSpec((Hp, Dp), lambda i: (0, 0)),   # W2 (resident)
                    pl.BlockSpec((1, Dp),  lambda i: (0, 0)),   # b2
                ],
                out_specs=pl.BlockSpec((TM, Dp), lambda i: (i, 0)),
            ),
            compiler_params=pltpu.CompilerParams(
                dimension_semantics=("parallel",),
                vmem_limit_bytes=vmem_limit,
            ),
        )(x, w1p, b1p, w2p, b2p)
    else:
        n_h = Hp // TH
        if out_dtype == jnp.float32:
            kernel, scratch = _chunked_kernel_direct, []
        else:
            kernel = _chunked_kernel_scratch
            scratch = [pltpu.VMEM((TM, Dp), jnp.float32)]
        out = pl.pallas_call(
            kernel,
            out_shape=jax.ShapeDtypeStruct((R_pad, Dp), out_dtype),
            grid_spec=pltpu.PrefetchScalarGridSpec(
                num_scalar_prefetch=0,
                grid=(n_row, n_h),
                in_specs=[
                    pl.BlockSpec((TM, Dp), lambda i, k: (i, 0)),  # feats rows
                    pl.BlockSpec((Dp, TH), lambda i, k: (0, k)),  # W1 (H-chunk)
                    pl.BlockSpec((1, TH),  lambda i, k: (0, k)),  # b1
                    pl.BlockSpec((TH, Dp), lambda i, k: (k, 0)),  # W2 (H-chunk)
                    pl.BlockSpec((1, Dp),  lambda i, k: (0, 0)),  # b2
                ],
                out_specs=pl.BlockSpec((TM, Dp), lambda i, k: (i, 0)),
                scratch_shapes=scratch,
            ),
            compiler_params=pltpu.CompilerParams(
                dimension_semantics=("parallel", "arbitrary"),
                vmem_limit_bytes=vmem_limit,
            ),
        )(x, w1p, b1p, w2p, b2p)

    feats_out = out[:R, :D] if pad_x else out
    # Residual.forward returns the coors produced by fn; our fn passes them through.
    return feats_out.reshape(B, N, D), coors


# ---------------------------------------------------------------------------
# reference + tests
# ---------------------------------------------------------------------------
def residual_reference(feats, coors, w1, b1, w2, b2):
    h = jax.nn.gelu(feats @ w1 + b1.reshape(1, -1))
    y = h @ w2 + b2.reshape(1, -1)
    return feats + y, coors


def _run_case(key, B, N, D, H, *, feats_dtype=jnp.float32, atol=5e-3, rtol=1e-2,
              **kwargs):
    k_f, k_c, k_w1, k_b1, k_w2, k_b2 = jax.random.split(key, 6)
    feats = jax.random.normal(k_f, (B, N, D), dtype=jnp.float32).astype(feats_dtype)
    coors = jax.random.normal(k_c, (B, N, 3), dtype=jnp.float32)
    w1 = jax.random.normal(k_w1, (D, H), dtype=jnp.float32) * 0.02
    b1 = jax.random.normal(k_b1, (1, H), dtype=jnp.float32) * 0.02
    w2 = jax.random.normal(k_w2, (H, D), dtype=jnp.float32) * 0.02
    b2 = jax.random.normal(k_b2, (1, D), dtype=jnp.float32) * 0.02

    feats_out, coors_out = residual_forward(feats, coors, w1, b1, w2, b2, **kwargs)
    jax.block_until_ready((feats_out, coors_out))

    ref_feats, ref_coors = residual_reference(
        feats.astype(jnp.float32), coors, w1, b1, w2, b2)
    assert feats_out.shape == (B, N, D)
    assert feats_out.dtype == feats.dtype
    assert coors_out.shape == (B, N, 3)
    assert jnp.allclose(feats_out.astype(jnp.float32), ref_feats,
                        atol=atol, rtol=rtol)
    assert jnp.allclose(coors_out, ref_coors)


if __name__ == "__main__":
    key = jax.random.PRNGKey(0)
    k1, k2, k3 = jax.random.split(key, 3)

    # 1) Common path: weights VMEM-resident, bf16 matmul operands, single grid axis.
    _run_case(k1, B=2, N=8, D=32, H=4 * 32, atol=5e-3, rtol=1e-2)

    # 2) Forced H-chunked path with f32 compute (direct accumulation into
    #    out_ref, no scratch), multiple row tiles x multiple hidden chunks.
    _run_case(k2, B=2, N=24, D=32, H=256,
              weights_resident=False, row_tile=16, h_tile=128,
              compute_dtype=jnp.float32, atol=1e-4, rtol=1e-4)

    # 3) Forced H-chunked path with bf16 feats/output (f32 scratch accumulator).
    _run_case(k3, B=2, N=8, D=32, H=256,
              feats_dtype=jnp.bfloat16, weights_resident=False, h_tile=128,
              atol=3e-2, rtol=3e-2)

    print("KERNEL_OK")
</pallas_src>

<mosaic_0001>
module attributes {stable_mosaic.version = 11 : i64} {
  func.func @_resident_kernel(%arg0: i32, %arg1: memref<16x128xf32, #tpu.memory_space<vmem>>, %arg2: memref<128x128xbf16, #tpu.memory_space<vmem>>, %arg3: memref<1x128xf32, #tpu.memory_space<vmem>>, %arg4: memref<128x128xbf16, #tpu.memory_space<vmem>>, %arg5: memref<1x128xf32, #tpu.memory_space<vmem>>, %arg6: memref<16x128xf32, #tpu.memory_space<vmem>>) attributes {dimension_semantics = [#tpu.dimension_semantics<parallel>], iteration_bounds = array<i64: 1>, scalar_prefetch = 0 : i64, scratch_operands = 0 : i64, tpu.core_type = #tpu.core_type<tc>, window_params = [{transform_indices = @transform_0, window_bounds = array<i64: 16, 128>}, {pipeline_mode = #tpu.pipeline_mode<synchronous>, transform_indices = @transform_1, window_bounds = array<i64: 128, 128>}, {pipeline_mode = #tpu.pipeline_mode<synchronous>, transform_indices = @transform_2, window_bounds = array<i64: 1, 128>}, {pipeline_mode = #tpu.pipeline_mode<synchronous>, transform_indices = @transform_3, window_bounds = array<i64: 128, 128>}, {pipeline_mode = #tpu.pipeline_mode<synchronous>, transform_indices = @transform_4, window_bounds = array<i64: 1, 128>}, {transform_indices = @transform_5, window_bounds = array<i64: 16, 128>}]} {
    %c0 = arith.constant 0 : index
    %c0_0 = arith.constant 0 : index
    %0 = vector.load %arg1[%c0, %c0_0] : memref<16x128xf32, #tpu.memory_space<vmem>>, vector<16x128xf32>
    %1 = arith.truncf %0 : vector<16x128xf32> to vector<16x128xbf16>
    %c0_1 = arith.constant 0 : index
    %c0_2 = arith.constant 0 : index
    %2 = vector.load %arg2[%c0_1, %c0_2] : memref<128x128xbf16, #tpu.memory_space<vmem>>, vector<128x128xbf16>
    %cst = arith.constant dense<0.000000e+00> : vector<16x128xf32>
    %3 = tpu.matmul %1, %2, %cst {dimension_numbers = #tpu.dot_dimension_numbers<[1], [0], [0], [1], [0, 0, 1, 1], [], []>} : vector<16x128xbf16>, vector<128x128xbf16>, vector<16x128xf32> -> vector<16x128xf32>
    %c0_3 = arith.constant 0 : index
    %c0_4 = arith.constant 0 : index
    %4 = vector.load %arg3[%c0_3, %c0_4] : memref<1x128xf32, #tpu.memory_space<vmem>>, vector<1x128xf32>
    %5 = vector.broadcast %4 : vector<1x128xf32> to vector<16x128xf32>
    %6 = arith.addf %3, %5 : vector<16x128xf32>
    %7 = arith.mulf %6, %6 : vector<16x128xf32>
    %8 = arith.mulf %6, %7 : vector<16x128xf32>
    %cst_5 = arith.constant 4.471500e-02 : f32
    %9 = vector.broadcast %cst_5 : f32 to vector<16x128xf32>
    %10 = arith.mulf %9, %8 : vector<16x128xf32>
    %11 = arith.addf %6, %10 : vector<16x128xf32>
    %cst_6 = arith.constant 0.797884583 : f32
    %12 = vector.broadcast %cst_6 : f32 to vector<16x128xf32>
    %13 = arith.mulf %12, %11 : vector<16x128xf32>
    %14 = math.tanh %13 : vector<16x128xf32>
    %cst_7 = arith.constant 1.000000e+00 : f32
    %15 = vector.broadcast %cst_7 : f32 to vector<16x128xf32>
    %16 = arith.addf %15, %14 : vector<16x128xf32>
    %cst_8 = arith.constant 5.000000e-01 : f32
    %17 = vector.broadcast %cst_8 : f32 to vector<16x128xf32>
    %18 = arith.mulf %17, %16 : vector<16x128xf32>
    %19 = arith.mulf %6, %18 : vector<16x128xf32>
    %20 = arith.truncf %19 : vector<16x128xf32> to vector<16x128xbf16>
    %c0_9 = arith.constant 0 : index
    %c0_10 = arith.constant 0 : index
    %21 = vector.load %arg4[%c0_9, %c0_10] : memref<128x128xbf16, #tpu.memory_space<vmem>>, vector<128x128xbf16>
    %cst_11 = arith.constant dense<0.000000e+00> : vector<16x128xf32>
    %22 = tpu.matmul %20, %21, %cst_11 {dimension_numbers = #tpu.dot_dimension_numbers<[1], [0], [0], [1], [0, 0, 1, 1], [], []>} : vector<16x128xbf16>, vector<128x128xbf16>, vector<16x128xf32> -> vector<16x128xf32>
    %23 = arith.addf %0, %22 : vector<16x128xf32>
    %c0_12 = arith.constant 0 : index
    %c0_13 = arith.constant 0 : index
    %24 = vector.load %arg5[%c0_12, %c0_13] : memref<1x128xf32, #tpu.memory_space<vmem>>, vector<1x128xf32>
    %25 = vector.broadcast %24 : vector<1x128xf32> to vector<16x128xf32>
    %26 = arith.addf %23, %25 : vector<16x128xf32>
    %c0_14 = arith.constant 0 : index
    %c0_15 = arith.constant 0 : index
    %27 = vector.load %arg6[%c0_14, %c0_15] : memref<16x128xf32, #tpu.memory_space<vmem>>, vector<16x128xf32>
    tpu.vector_store %arg6[%c0_14, %c0_15], %26 {strides = array<i32>} : memref<16x128xf32, #tpu.memory_space<vmem>>, vector<16x128xf32>,
    return
  }
  func.func @transform_0(%arg0: i32) -> (i32, i32) {
    %c0_i32 = arith.constant 0 : i32
    %c0_i32_0 = arith.constant 0 : i32
    return %arg0, %c0_i32 : i32, i32
  }
  func.func @transform_1(%arg0: i32) -> (i32, i32) {
    %c0_i32 = arith.constant 0 : i32
    %c0_i32_0 = arith.constant 0 : i32
    %c0_i32_1 = arith.constant 0 : i32
    return %c0_i32, %c0_i32_0 : i32, i32
  }
  func.func @transform_2(%arg0: i32) -> (i32, i32) {
    %c0_i32 = arith.constant 0 : i32
    %c0_i32_0 = arith.constant 0 : i32
    %c0_i32_1 = arith.constant 0 : i32
    return %c0_i32, %c0_i32_0 : i32, i32
  }
  func.func @transform_3(%arg0: i32) -> (i32, i32) {
    %c0_i32 = arith.constant 0 : i32
    %c0_i32_0 = arith.constant 0 : i32
    %c0_i32_1 = arith.constant 0 : i32
    return %c0_i32, %c0_i32_0 : i32, i32
  }
  func.func @transform_4(%arg0: i32) -> (i32, i32) {
    %c0_i32 = arith.constant 0 : i32
    %c0_i32_0 = arith.constant 0 : i32
    %c0_i32_1 = arith.constant 0 : i32
    return %c0_i32, %c0_i32_0 : i32, i32
  }
  func.func @transform_5(%arg0: i32) -> (i32, i32) {
    %c0_i32 = arith.constant 0 : i32
    %c0_i32_0 = arith.constant 0 : i32
    return %arg0, %c0_i32 : i32, i32
  }
}

</mosaic_0001>

<llo_original>
// kernel: tpu_custom_call.1
$region0: #{tpu_custom_call.1}
  #allocation0 [shape = 'u32[]', space=smem, size = 0x4, offset = 0x4, fixed_abs, tag = 'smem constant byte address 0x4 - core index']
  #allocation1 [shape = 'u32[144,128]{1,0:T(1,128)}', space=vmem, size = 0x12000, scoped, tag = 'internal scratch']
  %s0 = inlined_call_operand.hbm [shape: f32[16,128], index: 0, kind: input, shape index: {}]
  %s1 = inlined_call_operand.hbm [shape: bf16[128,128], index: 1, kind: input, shape index: {}]
  %s2 = inlined_call_operand.vmem [shape: f32[1,128], index: 2, kind: input, shape index: {}]
  %s3 = inlined_call_operand.hbm [shape: bf16[128,128], index: 3, kind: input, shape index: {}]
  %s4 = inlined_call_operand.vmem [shape: f32[1,128], index: 4, kind: input, shape index: {}]
  %s5 = inlined_call_operand.hbm [shape: f32[16,128], index: 5, kind: output, shape index: {}]
  %s6 = sld [smem:[#allocation0]]
  $region42: #{tpu_custom_call.1} parent=0
    _
  %s8 = ssub.s32 1, %s6
  %s9 = scalar_select 0, %s8, %s6
  $region1: #{tpu_custom_call.1} parent=0
    #allocation2 [shape = 'u8[8192]{0}', space=vmem, size = 0x2000, scoped, tag = 'input window, operand 0, single buffered']
    #allocation3 [shape = 's32[1]{0}', space=sflag, size = 0x4, scoped, tag = 'scoped memory for tpu_custom_call.1']
    #allocation4 [shape = 's32[1]{0}', space=sflag, size = 0x4, scoped, tag = 'scoped memory for tpu_custom_call.1']
    #allocation5 [shape = 'u8[32768]{0}', space=vmem, size = 0x8000, scoped, tag = 'input window, operand 1, single buffered']
    #allocation6 [shape = 's32[1]{0}', space=sflag, size = 0x4, scoped, tag = 'scoped memory for tpu_custom_call.1']
    #allocation7 [shape = 'u8[32768]{0}', space=vmem, size = 0x8000, scoped, tag = 'input window, operand 3, single buffered']
    #allocation8 [shape = 'u8[8192]{0}', space=vmem, size = 0x2000, scoped, tag = 'output window, operand 0, single buffered']
    %10 = vsyncpa [#allocation3], 0
    %11 = vsyncpa [#allocation6], 0
    %12 = vsyncpa [#allocation4], 0
    // Predicated region
    $region2: #{tpu_custom_call.1} parent=1 // pred_check
      _
    $region3: #{tpu_custom_call.1} parent=1 // pred_check_branch
      %14 = sbr.rel (0) target = $region5
    $region4: #{tpu_custom_call.1} parent=1 // pred_region
      %s16 = ssub.s32 256, 256
      %17 = vsyncadd [#allocation3], %s16
      %s18 = sshll.u32 [#allocation2], 4
      %s19 = int_to_ptr.vmem [resolvable:$true] %s18
      %24 = dma.hbm_to_vmem [thread:$0]  %s0, 256, %s19, [#allocation3], 128, 128, 8
    $region5: #{tpu_custom_call.1} parent=1 // pred_fallthru
      _
    // Predicated region
    $region6: #{tpu_custom_call.1} parent=1 // pred_check
      _
    $region7: #{tpu_custom_call.1} parent=1 // pred_check_branch
      %26 = sbr.rel (0) target = $region9
    $region8: #{tpu_custom_call.1} parent=1 // pred_region
      %s28 = ssub.s32 1024, 1024
      %29 = vsyncadd [#allocation6], %s28
      %s30 = sshll.u32 [#allocation5], 4
      %s31 = int_to_ptr.vmem [resolvable:$true] %s30
      %36 = dma.hbm_to_vmem [thread:$0]  %s1, 1024, %s31, [#allocation6], 64, 64, 4
    $region9: #{tpu_custom_call.1} parent=1 // pred_fallthru
      _
    // Predicated region
    $region10: #{tpu_custom_call.1} parent=1 // pred_check
      _
    $region11: #{tpu_custom_call.1} parent=1 // pred_check_branch
      %38 = sbr.rel (0) target = $region13
    $region12: #{tpu_custom_call.1} parent=1 // pred_region
      _
    $region13: #{tpu_custom_call.1} parent=1 // pred_fallthru
      _
    // Predicated region
    $region14: #{tpu_custom_call.1} parent=1 // pred_check
      _
    $region15: #{tpu_custom_call.1} parent=1 // pred_check_branch
      %40 = sbr.rel (0) target = $region17
    $region16: #{tpu_custom_call.1} parent=1 // pred_region
      %s42 = ssub.s32 1024, 1024
      %43 = vsyncadd [#allocation6], %s42
      %s44 = sshll.u32 [#allocation7], 4
      %s45 = int_to_ptr.vmem [resolvable:$true] %s44
      %50 = dma.hbm_to_vmem [thread:$0]  %s3, 1024, %s45, [#allocation6], 64, 64, 4
    $region17: #{tpu_custom_call.1} parent=1 // pred_fallthru
      _
    // Predicated region
    $region18: #{tpu_custom_call.1} parent=1 // pred_check
      _
    $region19: #{tpu_custom_call.1} parent=1 // pred_check_branch
      %52 = sbr.rel (0) target = $region21
    $region20: #{tpu_custom_call.1} parent=1 // pred_region
      _
    $region21: #{tpu_custom_call.1} parent=1 // pred_fallthru
      _
    // Predicated region
    $region22: #{tpu_custom_call.1} parent=1 // pred_check
      _
    $region23: #{tpu_custom_call.1} parent=1 // pred_check_branch
      %54 = sbr.rel (0) target = $region25
    $region24: #{tpu_custom_call.1} parent=1 // pred_region
      %55 = dma.done [#allocation3], 256
    $region25: #{tpu_custom_call.1} parent=1 // pred_fallthru
      _
    // Predicated region
    $region26: #{tpu_custom_call.1} parent=1 // pred_check
      _
    $region27: #{tpu_custom_call.1} parent=1 // pred_check_branch
      %57 = sbr.rel (0) target = $region29
    $region28: #{tpu_custom_call.1} parent=1 // pred_region
      %58 = dma.done [#allocation6], 1024
    $region29: #{tpu_custom_call.1} parent=1 // pred_fallthru
      _
    // Predicated region
    $region30: #{tpu_custom_call.1} parent=1 // pred_check
      _
    $region31: #{tpu_custom_call.1} parent=1 // pred_check_branch
      %60 = sbr.rel (0) target = $region33
    $region32: #{tpu_custom_call.1} parent=1 // pred_region
      %61 = dma.done [#allocation6], 1024
    $region33: #{tpu_custom_call.1} parent=1 // pred_fallthru
      _
    %v63 = vld [vmem:[#allocation2] sm:$0xff]
    %v64 = vld [vmem:[#allocation2 + $0x8] sm:$0xff]
    %v65 = vpack.c.bf16 %v64, %v63
    %v66 = vld [vmem:[#allocation5] sm:$0xf]
    %v67 = vld [vmem:[#allocation5 + $0x4] sm:$0xf]
    %v68 = vld [vmem:[#allocation5 + $0x8] sm:$0xf]
    %v69 = vld [vmem:[#allocation5 + $0xc] sm:$0xf]
    %v70 = vld [vmem:[#allocation5 + $0x10] sm:$0xf]
    %v71 = vld [vmem:[#allocation5 + $0x14] sm:$0xf]
    %v72 = vld [vmem:[#allocation5 + $0x18] sm:$0xf]
    %v73 = vld [vmem:[#allocation5 + $0x1c] sm:$0xf]
    %v74 = vld [vmem:[#allocation5 + $0x20] sm:$0xf]
    %v75 = vld [vmem:[#allocation5 + $0x24] sm:$0xf]
    %v76 = vld [vmem:[#allocation5 + $0x28] sm:$0xf]
    %v77 = vld [vmem:[#allocation5 + $0x2c] sm:$0xf]
    %v78 = vld [vmem:[#allocation5 + $0x30] sm:$0xf]
    %v79 = vld [vmem:[#allocation5 + $0x34] sm:$0xf]
    %v80 = vld [vmem:[#allocation5 + $0x38] sm:$0xf]
    %v81 = vld [vmem:[#allocation5 + $0x3c] sm:$0xf]
    %v82 = vld [vmem:[%s2] sm:$0x1]
    %v84 = vlaneseq
    %v85 = vshrl.u32 %v84, 7
    %v86 = vsub.s32 0, %v85
    %v87 = vrot.slane %v82, %v86
    %v105 = vunpack.c.l.b16 %v66
    %v106 = vunpack.c.l.b16 %v67
    %v107 = vunpack.c.l.b16 %v68
    %v108 = vunpack.c.l.b16 %v69
    %v109 = vunpack.c.l.b16 %v70
    %v110 = vunpack.c.l.b16 %v71
    %v111 = vunpack.c.l.b16 %v72
    %v112 = vunpack.c.l.b16 %v73
    %v113 = vunpack.c.l.b16 %v74
    %v114 = vunpack.c.l.b16 %v75
    %v115 = vunpack.c.l.b16 %v76
    %v116 = vunpack.c.l.b16 %v77
    %v117 = vunpack.c.l.b16 %v78
    %v118 = vunpack.c.l.b16 %v79
    %v119 = vunpack.c.l.b16 %v80
    %v120 = vunpack.c.l.b16 %v81
    %v121 = vpack.c.b16 %v106, %v105
    %v122 = vpack.c.b16 %v108, %v107
    %v123 = vpack.c.b16 %v110, %v109
    %v124 = vpack.c.b16 %v112, %v111
    %v125 = vpack.c.b16 %v114, %v113
    %v126 = vpack.c.b16 %v116, %v115
    %v127 = vpack.c.b16 %v118, %v117
    %v128 = vpack.c.b16 %v120, %v119
    %137 = vmatprep.subr.bf16.mxu0 0
    %138 = vmatpush1.bf16.msra.mxu0 %v128
    %139 = vmatprep.subr.bf16.mxu0 0
    %140 = vmatpush1.bf16.msra.mxu0 %v127
    %141 = vmatprep.subr.bf16.mxu0 0
    %142 = vmatpush1.bf16.msra.mxu0 %v126
    %143 = vmatprep.subr.bf16.mxu0 0
    %144 = vmatpush1.bf16.msra.mxu0 %v125
    %145 = vmatprep.subr.bf16.mxu0 0
    %146 = vmatpush1.bf16.msra.mxu0 %v124
    %147 = vmatprep.subr.bf16.mxu0 0
    %148 = vmatpush1.bf16.msra.mxu0 %v123
    %149 = vmatprep.subr.bf16.mxu0 0
    %150 = vmatpush1.bf16.msra.mxu0 %v122
    %151 = vmatprep.subr.bf16.mxu0 0
    %152 = vmatpush1.bf16.msra.mxu0 %v121
    %153 = vmatprep.subr.bf16.mxu0 0
    %154 = vmatpush2.bf16.msra.mxu0 0
    %155 = vmatprep.subr.bf16.mxu0 0
    %156 = vmatpush2.bf16.msra.mxu0 0
    %157 = vmatprep.subr.bf16.mxu0 0
    %158 = vmatpush2.bf16.msra.mxu0 0
    %159 = vmatprep.subr.bf16.mxu0 0
    %160 = vmatpush2.bf16.msra.mxu0 0
    %161 = vmatprep.subr.bf16.mxu0 0
    %162 = vmatpush2.bf16.msra.mxu0 0
    %163 = vmatprep.subr.bf16.mxu0 0
    %164 = vmatpush2.bf16.msra.mxu0 0
    %165 = vmatprep.subr.bf16.mxu0 0
    %166 = vmatpush2.bf16.msra.mxu0 0
    %167 = vmatprep.subr.bf16.mxu0 0
    %168 = vmatpush2.bf16.msra.mxu0 0
    %169 = vmatprep.mubr.bf16.mxu0 0
    %170 = vmatmul.mubr.bf16.gmra.mxu0 %v65
    %v171 = vpop.f32.mrf.mxu0
    %v172 = vadd.f32 %v87, %v171
    %v173 = vpop.f32.mrf.mxu0
    %v174 = vpop.f32.mrf.mxu0
    %v175 = vadd.f32 %v87, %v174
    %v176 = vpop.f32.mrf.mxu0
    %177 = vdwg.mxu0
    %v178 = vmul.f32 %v172, %v172
    %v179 = vmul.f32 %v175, %v175
    %v180 = vmul.f32 %v172, %v178
    %v181 = vmul.f32 %v175, %v179
    %v182 = vmul.f32 %v180, 0.044715
    %v183 = vmul.f32 %v181, 0.044715
    %v184 = vadd.f32 %v172, %v182
    %v185 = vadd.f32 %v175, %v183
    %v186 = vmul.f32 %v184, 0.7978846
    %v187 = vmul.f32 %v185, 0.7978846
    %v188 = vtanh.pop %v186
    %v189 = vtanh.pop %v187
    %v190 = vadd.f32 %v188, 1.0
    %v191 = vadd.f32 %v189, 1.0
    %v192 = vmul.f32 %v190, 0.5
    %v193 = vmul.f32 %v191, 0.5
    %v194 = vmul.f32 %v172, %v192
    %v195 = vmul.f32 %v175, %v193
    %v196 = vpack.c.bf16 %v195, %v194
    %v197 = vld [vmem:[#allocation7] sm:$0xf]
    %v198 = vld [vmem:[#allocation7 + $0x4] sm:$0xf]
    %v199 = vld [vmem:[#allocation7 + $0x8] sm:$0xf]
    %v200 = vld [vmem:[#allocation7 + $0xc] sm:$0xf]
    %v201 = vld [vmem:[#allocation7 + $0x10] sm:$0xf]
    %v202 = vld [vmem:[#allocation7 + $0x14] sm:$0xf]
    %v203 = vld [vmem:[#allocation7 + $0x18] sm:$0xf]
    %v204 = vld [vmem:[#allocation7 + $0x1c] sm:$0xf]
    %v205 = vld [vmem:[#allocation7 + $0x20] sm:$0xf]
    %v206 = vld [vmem:[#allocation7 + $0x24] sm:$0xf]
    %v207 = vld [vmem:[#allocation7 + $0x28] sm:$0xf]
    %v208 = vld [vmem:[#allocation7 + $0x2c] sm:$0xf]
    %v209 = vld [vmem:[#allocation7 + $0x30] sm:$0xf]
    %v210 = vld [vmem:[#allocation7 + $0x34] sm:$0xf]
    %v211 = vld [vmem:[#allocation7 + $0x38] sm:$0xf]
    %v212 = vld [vmem:[#allocation7 + $0x3c] sm:$0xf]
    %v229 = vunpack.c.l.b16 %v197
    %v230 = vunpack.c.l.b16 %v198
    %v231 = vunpack.c.l.b16 %v199
    %v232 = vunpack.c.l.b16 %v200
    %v233 = vunpack.c.l.b16 %v201
    %v234 = vunpack.c.l.b16 %v202
    %v235 = vunpack.c.l.b16 %v203
    %v236 = vunpack.c.l.b16 %v204
    %v237 = vunpack.c.l.b16 %v205
    %v238 = vunpack.c.l.b16 %v206
    %v239 = vunpack.c.l.b16 %v207
    %v240 = vunpack.c.l.b16 %v208
    %v241 = vunpack.c.l.b16 %v209
    %v242 = vunpack.c.l.b16 %v210
    %v243 = vunpack.c.l.b16 %v211
    %v244 = vunpack.c.l.b16 %v212
    %v245 = vpack.c.b16 %v230, %v229
    %v246 = vpack.c.b16 %v232, %v231
    %v247 = vpack.c.b16 %v234, %v233
    %v248 = vpack.c.b16 %v236, %v235
    %v249 = vpack.c.b16 %v238, %v237
    %v250 = vpack.c.b16 %v240, %v239
    %v251 = vpack.c.b16 %v242, %v241
    %v252 = vpack.c.b16 %v244, %v243
    %261 = vmatprep.subr.bf16.mxu0 0
    %262 = vmatpush1.bf16.msra.mxu0 %v252
    %263 = vmatprep.subr.bf16.mxu0 0
    %264 = vmatpush1.bf16.msra.mxu0 %v251
    %265 = vmatprep.subr.bf16.mxu0 0
    %266 = vmatpush1.bf16.msra.mxu0 %v250
    %267 = vmatprep.subr.bf16.mxu0 0
    %268 = vmatpush1.bf16.msra.mxu0 %v249
    %269 = vmatprep.subr.bf16.mxu0 0
    %270 = vmatpush1.bf16.msra.mxu0 %v248
    %271 = vmatprep.subr.bf16.mxu0 0
    %272 = vmatpush1.bf16.msra.mxu0 %v247
    %273 = vmatprep.subr.bf16.mxu0 0
    %274 = vmatpush1.bf16.msra.mxu0 %v246
    %275 = vmatprep.subr.bf16.mxu0 0
    %276 = vmatpush1.bf16.msra.mxu0 %v245
    %277 = vmatprep.subr.bf16.mxu0 0
    %278 = vmatpush2.bf16.msra.mxu0 0
    %279 = vmatprep.subr.bf16.mxu0 0
    %280 = vmatpush2.bf16.msra.mxu0 0
    %281 = vmatprep.subr.bf16.mxu0 0
    %282 = vmatpush2.bf16.msra.mxu0 0
    %283 = vmatprep.subr.bf16.mxu0 0
    %284 = vmatpush2.bf16.msra.mxu0 0
    %285 = vmatprep.subr.bf16.mxu0 0
    %286 = vmatpush2.bf16.msra.mxu0 0
    %287 = vmatprep.subr.bf16.mxu0 0
    %288 = vmatpush2.bf16.msra.mxu0 0
    %289 = vmatprep.subr.bf16.mxu0 0
    %290 = vmatpush2.bf16.msra.mxu0 0
    %291 = vmatprep.subr.bf16.mxu0 0
    %292 = vmatpush2.bf16.msra.mxu0 0
    %293 = vmatprep.mubr.bf16.mxu0 0
    %294 = vmatmul.mubr.bf16.gmra.mxu0 %v196
    %v295 = vpop.f32.mrf.mxu0
    %v296 = vadd.f32 0.0, %v295
    %v297 = vpop.f32.mrf.mxu0
    %v298 = vpop.f32.mrf.mxu0
    %v299 = vadd.f32 0.0, %v298
    %v300 = vpop.f32.mrf.mxu0
    %301 = vdwg.mxu0
    %v302 = vadd.f32 %v63, %v296
    %v303 = vadd.f32 %v64, %v299
    %v304 = vld [vmem:[%s4] sm:$0x1]
    %v306 = vlaneseq
    %v307 = vshrl.u32 %v306, 7
    %v308 = vsub.s32 0, %v307
    %v309 = vrot.slane %v304, %v308
    %v311 = vadd.f32 %v302, %v309
    %v312 = vadd.f32 %v303, %v309
    %313 = vst [vmem:[#allocation8] sm:$0xff] %v311
    %314 = vst [vmem:[#allocation8 + $0x8] sm:$0xff] %v312
    // Predicated region
    $region34: #{tpu_custom_call.1} parent=1 // pred_check
      _
    $region35: #{tpu_custom_call.1} parent=1 // pred_check_branch
      %316 = sbr.rel (0) target = $region37
    $region36: #{tpu_custom_call.1} parent=1 // pred_region
      %s318 = ssub.s32 256, 256
      %319 = vsyncadd [#allocation4], %s318
      %s320 = sshll.u32 [#allocation8], 4
      %s321 = int_to_ptr.vmem [resolvable:$true] %s320
      %326 = dma.vmem_to_hbm [thread:$0]  %s321, 256, %s5, [#allocation4], 128, 128, 8
    $region37: #{tpu_custom_call.1} parent=1 // pred_fallthru
      _
    // Predicated region
    $region38: #{tpu_custom_call.1} parent=1 // pred_check
      _
    $region39: #{tpu_custom_call.1} parent=1 // pred_check_branch
      %328 = sbr.rel (0) target = $region41
    $region40: #{tpu_custom_call.1} parent=1 // pred_region
      %329 = dma.done [#allocation4], 256
    $region41: #{tpu_custom_call.1} parent=1 // pred_fallthru
      _
    %330 = vsyncpa [#allocation3], 1
    %331 = vsyncpa [#allocation6], 1
    %332 = vsyncpa [#allocation4], 1

</llo_original>
